<compile_context>
chip_gen: v7x
topology: tpu7x:2x2x1
jax: 0.10.0
libtpu: 0.0.40
codegen_flags: <defaults>
</compile_context>

<pallas_src>
import jax
import jax.numpy as jnp
from jax.experimental import pallas as pl
from jax.experimental.pallas import tpu as pltpu


def _knn_sqdist_kernel(set_ref, test_ref, out_ref):
    # set_ref : (D, TILE_N) bf16 slab of the transposed column-normalised training set
    # test_ref: (D, 1) f32 pre-normalised test sample (grid-invariant, resident block)
    # out_ref : (1, TILE_N) f32 squared Euclidean distances (lane-dense)
    x = set_ref[...].astype(jnp.float32)          # upcast streamed bf16 slab to f32
    diff = x - test_ref[...]                      # lane-broadcast of the (D, 1) test vec
    # torch.abs before the L2 norm is a no-op (values get squared) -> omitted.
    out_ref[...] = jnp.sum(diff * diff, axis=0, keepdims=True)


def _knn_sq_distances(nset_t, test_col, tile_n):
    """nset_t: (D, N_pad) bf16 transposed normalised set; test_col: (D, 1) f32 unit vector."""
    d, n_pad = nset_t.shape
    return pl.pallas_call(
        _knn_sqdist_kernel,
        out_shape=jax.ShapeDtypeStruct((1, n_pad), jnp.float32),
        grid_spec=pltpu.PrefetchScalarGridSpec(
            num_scalar_prefetch=0,
            grid=(n_pad // tile_n,),
            in_specs=[
                pl.BlockSpec((d, tile_n), lambda i: (0, i)),   # streamed set slab
                pl.BlockSpec((d, 1), lambda i: (0, 0)),        # resident test sample
            ],
            out_specs=pl.BlockSpec((1, tile_n), lambda i: (0, i)),
        ),
        compiler_params=pltpu.CompilerParams(
            dimension_semantics=("parallel",),       # slabs independent -> megacore split
            vmem_limit_bytes=48 * 1024 * 1024,       # > default scoped limit, < v7x physical
        ),
    )(nset_t, test_col)


def _pick_tile_n(n, d, set_itemsize, budget_bytes=20 << 20):
    """Largest lane-aligned tile whose double-buffered working set fits the VMEM budget."""
    # per streamed column: 2 input buffers (bf16) + 2 output buffers (f32 row)
    per_col = 2 * d * set_itemsize + 2 * 4
    tile = max(128, (budget_bytes // per_col) // 128 * 128)
    n_pad128 = ((n + 127) // 128) * 128
    tile = min(tile, n_pad128)
    # keep >= 2 grid steps when possible so pipelining / both v7x TCs get work
    if n_pad128 >= 256:
        half = ((n_pad128 // 2 + 127) // 128) * 128
        tile = min(tile, half)
    return tile


class GetKNearestNeighbours:
    """JAX/Pallas port of the PyTorch get_k_nearest_neighbours module."""

    def __init__(self, train_data, *, tile_n=None, set_dtype=jnp.bfloat16):
        train_data = jnp.asarray(train_data, jnp.float32)
        self.n, self.d = train_data.shape
        # Module __init__ (one-time setup): per-column (feature) normalisation in f32.
        col_norms = jnp.linalg.norm(train_data, axis=0)
        nset = train_data / col_norms                            # (N, D)
        itemsize = jnp.dtype(set_dtype).itemsize
        if tile_n is None:
            tile_n = _pick_tile_n(self.n, self.d, itemsize)
        assert tile_n % 128 == 0, "tile_n must be a multiple of 128 (lane width)"
        self.tile_n = tile_n
        n_pad = pl.cdiv(self.n, tile_n) * tile_n
        # Lane-dense kernel layout: transpose to (D, N_pad), bf16 storage (halved HBM
        # traffic for a bandwidth-bound kernel); padded columns sliced off before top-k.
        self.nset_t = (
            jnp.zeros((self.d, n_pad), set_dtype)
            .at[:, : self.n]
            .set(nset.T.astype(set_dtype))
        )

    def __call__(self, test_sample, k):
        t = jnp.asarray(test_sample, jnp.float32).reshape(self.d)
        t = t / jnp.linalg.norm(t)            # normalised ONCE, outside the grid body
        d2 = _knn_sq_distances(self.nset_t, t.reshape(self.d, 1), self.tile_n)[0, : self.n]
        # TODO(synk): torch.topk (data-dependent selection) has no clean Pallas
        # equivalent; the O(N*D) distance pass runs in the kernel, selection uses lax.top_k.
        neg_vals, idx = jax.lax.top_k(-d2, k)    # k must be a static Python int
        return jnp.sqrt(-neg_vals), idx          # sqrt only on the k winners (order-preserving)


# ---------------- pure-JAX reference (f32 end to end) ----------------
def reference_distances(train_data, test_sample):
    nset = train_data / jnp.linalg.norm(train_data, axis=0)
    t = test_sample / jnp.linalg.norm(test_sample)
    return jnp.linalg.norm(jnp.abs(t - nset), axis=1)


def reference(train_data, test_sample, k):
    d = reference_distances(train_data, test_sample)
    neg_vals, idx = jax.lax.top_k(-d, k)
    return -neg_vals, idx


if __name__ == "__main__":
    # Small shapes consistent with the module: N train points, D features.
    # N=200 pads to 256 -> a 2-step parallel grid of lane-dense 128-point slabs.
    N, D, K = 200, 32, 5

    key = jax.random.PRNGKey(0)
    k_train, k_test = jax.random.split(key)
    train_data = jax.random.normal(k_train, (N, D), dtype=jnp.float32)
    test_sample = jax.random.normal(k_test, (D,), dtype=jnp.float32)

    knn = GetKNearestNeighbours(train_data)
    vals, idx = knn(test_sample, K)
    vals = jax.block_until_ready(vals)
    idx = jax.block_until_ready(idx)

    ref_vals, ref_idx = reference(train_data, test_sample, K)
    ref_d = reference_distances(train_data, test_sample)

    assert vals.shape == (K,) and idx.shape == (K,), (vals.shape, idx.shape)
    # bf16 storage of the training set -> loosened tolerance vs f32 reference.
    assert jnp.allclose(vals, ref_vals, atol=2e-2, rtol=2e-2), "distance values mismatch"
    assert jnp.allclose(ref_d[idx], vals, atol=2e-2, rtol=2e-2), "index/value inconsistency"
    assert bool(jnp.all(vals[1:] >= vals[:-1] - 1e-6)), "k-nearest values not ascending"
    print("KERNEL_OK")
</pallas_src>

<mosaic_0001>
module attributes {stable_mosaic.version = 11 : i64} {
  func.func @_knn_sqdist_kernel(%arg0: i32, %arg1: memref<32x128xbf16, #tpu.memory_space<vmem>>, %arg2: memref<32x1xf32, #tpu.memory_space<vmem>>, %arg3: memref<1x128xf32, #tpu.memory_space<vmem>>) attributes {dimension_semantics = [#tpu.dimension_semantics<parallel>], iteration_bounds = array<i64: 2>, scalar_prefetch = 0 : i64, scratch_operands = 0 : i64, tpu.core_type = #tpu.core_type<tc>, window_params = [{transform_indices = @transform_0, window_bounds = array<i64: 32, 128>}, {pipeline_mode = #tpu.pipeline_mode<synchronous>, transform_indices = @transform_1, window_bounds = array<i64: 32, 1>}, {transform_indices = @transform_2, window_bounds = array<i64: 1, 128>}]} {
    %c0 = arith.constant 0 : index
    %c0_0 = arith.constant 0 : index
    %0 = vector.load %arg1[%c0, %c0_0] : memref<32x128xbf16, #tpu.memory_space<vmem>>, vector<32x128xbf16>
    %1 = arith.extf %0 : vector<32x128xbf16> to vector<32x128xf32>
    %c0_1 = arith.constant 0 : index
    %c0_2 = arith.constant 0 : index
    %2 = vector.load %arg2[%c0_1, %c0_2] : memref<32x1xf32, #tpu.memory_space<vmem>>, vector<32x1xf32>
    %3 = vector.broadcast %2 : vector<32x1xf32> to vector<32x128xf32>
    %4 = arith.subf %1, %3 : vector<32x128xf32>
    %5 = arith.mulf %4, %4 : vector<32x128xf32>
    %cst = arith.constant dense<0.000000e+00> : vector<128xf32>
    %6 = vector.multi_reduction <add>, %5, %cst [0] : vector<32x128xf32> to vector<128xf32>
    %7 = vector.shape_cast %6 : vector<128xf32> to vector<1x128xf32>
    %c0_3 = arith.constant 0 : index
    %c0_4 = arith.constant 0 : index
    %8 = vector.load %arg3[%c0_3, %c0_4] : memref<1x128xf32, #tpu.memory_space<vmem>>, vector<1x128xf32>
    tpu.vector_store %arg3[%c0_3, %c0_4], %7 {strides = array<i32>} : memref<1x128xf32, #tpu.memory_space<vmem>>, vector<1x128xf32>,
    return
  }
  func.func @transform_0(%arg0: i32) -> (i32, i32) {
    %c0_i32 = arith.constant 0 : i32
    %c0_i32_0 = arith.constant 0 : i32
    return %c0_i32, %arg0 : i32, i32
  }
  func.func @transform_1(%arg0: i32) -> (i32, i32) {
    %c0_i32 = arith.constant 0 : i32
    %c0_i32_0 = arith.constant 0 : i32
    %c0_i32_1 = arith.constant 0 : i32
    return %c0_i32, %c0_i32_0 : i32, i32
  }
  func.func @transform_2(%arg0: i32) -> (i32, i32) {
    %c0_i32 = arith.constant 0 : i32
    %c0_i32_0 = arith.constant 0 : i32
    return %c0_i32, %arg0 : i32, i32
  }
}

</mosaic_0001>

<llo_original>
// kernel: tpu_custom_call.1
$region0: #{tpu_custom_call.1}
  #allocation0 [shape = 'u32[]', space=smem, size = 0x4, offset = 0x4, fixed_abs, tag = 'smem constant byte address 0x4 - core index']
  #allocation1 [shape = 'u32[144,128]{1,0:T(1,128)}', space=vmem, size = 0x12000, scoped, tag = 'internal scratch']
  %s0 = inlined_call_operand.vmem [shape: bf16[32,256], index: 0, kind: input, shape index: {}]
  %s1 = inlined_call_operand.vmem [shape: f32[32,1], index: 1, kind: input, shape index: {}]
  %s2 = inlined_call_operand.hbm [shape: f32[1,256], index: 2, kind: output, shape index: {}]
  %s3 = sld [smem:[#allocation0]]
  $region82: #{tpu_custom_call.1} parent=0
    _
  %s5 = ssub.s32 1, %s3
  %s6 = scalar_select 0, %s5, %s3
  $region1: #{tpu_custom_call.1} parent=0
    #allocation2 [shape = 'u8[16384]{0}', space=vmem, size = 0x4000, scoped, tag = 'input window, operand 0']
    #allocation3 [shape = 'u8[1024]{0}', space=vmem, size = 0x400, scoped, tag = 'output window, operand 0']
    #allocation4 [shape = 's32[2]{0}', space=sflag, size = 0x8, scoped, tag = 'scoped memory for tpu_custom_call.1']
    %7 = vsyncpa [#allocation4], 0
    %s8 = scalar_lea.sflag [#allocation4], 1
    %9 = vsyncpa %s8, 0
    loop: start=0, step=1, limit=4
    $region2: #{tpu_custom_call.1} parent=1 // loop_pre_header
      _
    $region3: #{tpu_custom_call.1} parent=1 // loop_header
      %s11 = sphi 0, %s15
      %p12 = scmp.ge.s32.totalorder %s11, 4
      %s21 = sphi 0, %s23
      %s24 = sphi 0, %s21
      %s25 = sphi 0, %s24
      %s41 = sphi 0, %s25
      %s45 = sphi 0, %s45
      %s47 = sphi 0, %s45
      %s48 = sphi 0, %s47
      %s62 = sphi 0, %s48
      %s68 = sphi 0, %s70
      %s71 = sphi 0, %s68
      %s72 = sphi 0, %s71
      %s88 = sphi 0, %s72
    $region4: #{tpu_custom_call.1} parent=1 // loop_header_branch
      %14 = sbr.rel (%p12) target = $region8
    $region5: #{tpu_custom_call.1} parent=1 // loop_body
      %s16 = ssub.s32 %s11, 1
      %s17 = ssub.s32 %s11, 2
      %s18 = sadd.s32 %s11, 1
      %s19 = ssub.s32 %s11, %s18
      %p20 = scmp.eq.s32.totalorder %s19, 0
      %s22 = sadd.s32 %s21, 1
      %s23 = scalar_select %p20, %s21, %s22
      %p26 = pneg %p20
      %p27 = scmp.eq.s32.totalorder %s11, 1
      %p28 = por %p26, %p27
      %p29 = scmp.ne.s32.totalorder %s21, %s24
      %p30 = scmp.eq.s32.totalorder %s11, 0
      %p31 = por %p29, %p30
      %p32 = scmp.ne.s32.totalorder %s21, %s24
      %p33 = scmp.eq.s32.totalorder %s16, 1
      %p34 = por %p32, %p33
      %p35 = scmp.ne.s32.totalorder %s24, %s25
      %p36 = scmp.eq.s32.totalorder %s16, 0
      %p37 = por %p35, %p36
      %p38 = scmp.ne.s32.totalorder %s24, %s25
      %p39 = scmp.eq.s32.totalorder %s17, 1
      %p40 = por %p38, %p39
      %p42 = scmp.ne.s32.totalorder %s25, %s41
      %p43 = scmp.eq.s32.totalorder %s17, 0
      %p44 = por %p42, %p43
      %s46 = sadd.s32 %s45, 1
      %p49 = scmp.eq.s32.totalorder %s11, 1
      %p50 = scmp.ne.s32.totalorder %s45, %s47
      %p51 = scmp.eq.s32.totalorder %s11, 0
      %p52 = por %p50, %p51
      %p53 = scmp.ne.s32.totalorder %s45, %s47
      %p54 = scmp.eq.s32.totalorder %s16, 1
      %p55 = por %p53, %p54
      %p56 = scmp.ne.s32.totalorder %s47, %s48
      %p57 = scmp.eq.s32.totalorder %s16, 0
      %p58 = por %p56, %p57
      %p59 = scmp.ne.s32.totalorder %s47, %s48
      %p60 = scmp.eq.s32.totalorder %s17, 1
      %p61 = por %p59, %p60
      %p63 = scmp.ne.s32.totalorder %s48, %s62
      %p64 = scmp.eq.s32.totalorder %s17, 0
      %p65 = por %p63, %p64
      %s66 = ssub.s32 %s11, %s18
      %p67 = scmp.eq.s32.totalorder %s66, 0
      %s69 = sadd.s32 %s68, 1
      %s70 = scalar_select %p67, %s68, %s69
      %p73 = pneg %p67
      %p74 = scmp.eq.s32.totalorder %s11, 1
      %p75 = por %p73, %p74
      %p76 = scmp.ne.s32.totalorder %s68, %s71
      %p77 = scmp.eq.s32.totalorder %s11, 0
      %p78 = por %p76, %p77
      %p79 = scmp.ne.s32.totalorder %s68, %s71
      %p80 = scmp.eq.s32.totalorder %s16, 1
      %p81 = por %p79, %p80
      %p82 = scmp.ne.s32.totalorder %s71, %s72
      %p83 = scmp.eq.s32.totalorder %s16, 0
      %p84 = por %p82, %p83
      %p85 = scmp.ne.s32.totalorder %s71, %s72
      %p86 = scmp.eq.s32.totalorder %s17, 1
      %p87 = por %p85, %p86
      %p89 = scmp.ne.s32.totalorder %s72, %s88
      %p90 = scmp.eq.s32.totalorder %s17, 0
      %p91 = por %p89, %p90
      %p92 = scmp.le.s32.totalorder 1, %s11
      %p93 = scmp.lt.s32.totalorder %s11, 3
      %p94 = pnand %p92, %p93
      %p95 = pneg %p94
      // Predicated region
      $region9: #{tpu_custom_call.1} parent=5 // pred_check
        _
      $region10: #{tpu_custom_call.1} parent=5 // pred_check_branch
        %97 = sbr.rel (%p94) target = $region12
      $region11: #{tpu_custom_call.1} parent=5 // pred_region
        %s98 = ssub.s32 %s11, 1
        // Predicated region
        $region13: #{tpu_custom_call.1} parent=11 // pred_check
          %p99 = pneg %p58
        $region14: #{tpu_custom_call.1} parent=11 // pred_check_branch
          %101 = sbr.rel (%p99) target = $region16
        $region15: #{tpu_custom_call.1} parent=11 // pred_region
          _
        $region16: #{tpu_custom_call.1} parent=11 // pred_fallthru
          _
      $region12: #{tpu_custom_call.1} parent=5 // pred_fallthru
        _
      %p102 = scmp.lt.s32.totalorder %s11, 2
      // Predicated region
      $region17: #{tpu_custom_call.1} parent=5 // pred_check
        %p103 = pneg %p102
      $region18: #{tpu_custom_call.1} parent=5 // pred_check_branch
        %105 = sbr.rel (%p103) target = $region20
      $region19: #{tpu_custom_call.1} parent=5 // pred_region
        // Predicated region
        $region21: #{tpu_custom_call.1} parent=19 // pred_check
          %p106 = pneg %p31
        $region22: #{tpu_custom_call.1} parent=19 // pred_check_branch
          %108 = sbr.rel (%p106) target = $region24
        $region23: #{tpu_custom_call.1} parent=19 // pred_region
          %s109 = sand.u32 %s21, 1
          %s110 = sand.u32 %s21, 1
          %s111 = smul.addr %s110, 16
          %s112 = scalar_lea.vmem [#allocation2], %s111
          %s113 = smul.addr %s11, 4
          %s114 = scalar_lea.vmem %s0, %s113
          // Predicated region
          $region25: #{tpu_custom_call.1} parent=23 // pred_check
            _
          $region26: #{tpu_custom_call.1} parent=23 // pred_check_branch
            %116 = sbr.rel (0) target = $region28
          $region27: #{tpu_custom_call.1} parent=23 // pred_region
            // Predicated region
            $region29: #{tpu_custom_call.1} parent=27 // pred_check
              _
            $region30: #{tpu_custom_call.1} parent=27 // pred_check_branch
              %118 = sbr.rel target = $region32
            $region31: #{tpu_custom_call.1} parent=27 // pred_region
              // Predicated region
              $region44: #{tpu_custom_call.1} parent=31 // pred_check
                _
              $region45: #{tpu_custom_call.1} parent=31 // pred_check_branch
                %139 = sbr.rel (0) target = $region47
              $region46: #{tpu_custom_call.1} parent=31 // pred_region
                loop: start=0, step=1, limit=1
                $region48: #{tpu_custom_call.1} parent=46 // loop_pre_header
                  _
                $region49: #{tpu_custom_call.1} parent=46 // loop_header
                  %s141 = sphi 0, %s145
                  %p142 = scmp.ge.s32.totalorder %s141, 1
                  %s146 = sphi %s114, %s114
                  %s147 = sphi %s112, %s112
                $region50: #{tpu_custom_call.1} parent=46 // loop_header_branch
                  %144 = sbr.rel (%p142) target = $region54
                $region51: #{tpu_custom_call.1} parent=46 // loop_body
                  _
                $region52: #{tpu_custom_call.1} parent=46 // loop_footer
                  %s145 = sadd.s32 1, %s141
                $region53: #{tpu_custom_call.1} parent=46 // loop_footer_branch
                  %140 = sbr.rel target = $region49
                $region54: #{tpu_custom_call.1} parent=46 // loop_exit
                  _
                loop: start=0, step=1, limit=1
                $region55: #{tpu_custom_call.1} parent=46 // loop_pre_header
                  _
                $region56: #{tpu_custom_call.1} parent=46 // loop_header
                  %s150 = sphi 0, %s154
                  %p151 = scmp.ge.s32.totalorder %s150, 1
                  %s155 = sphi %s114, %s114
                  %s156 = sphi %s112, %s112
                $region57: #{tpu_custom_call.1} parent=46 // loop_header_branch
                  %153 = sbr.rel (%p151) target = $region61
                $region58: #{tpu_custom_call.1} parent=46 // loop_body
                  %v157 = vld [vmem:[%s155] sm:$0xf]
                  %158 = vst [vmem:[%s156] sm:$0xf] %v157
                  %v159 = vld [vmem:[%s155 + $0x8] sm:$0xf]
                  %160 = vst [vmem:[%s156 + $0x4] sm:$0xf] %v159
                  %v161 = vld [vmem:[%s155 + $0x10] sm:$0xf]
                  %162 = vst [vmem:[%s156 + $0x8] sm:$0xf] %v161
                  %v163 = vld [vmem:[%s155 + $0x18] sm:$0xf]
                  %164 = vst [vmem:[%s156 + $0xc] sm:$0xf] %v163
                $region59: #{tpu_custom_call.1} parent=46 // loop_footer
                  %s154 = sadd.s32 1, %s150
                $region60: #{tpu_custom_call.1} parent=46 // loop_footer_branch
                  %149 = sbr.rel target = $region56
                $region61: #{tpu_custom_call.1} parent=46 // loop_exit
                  _
              $region47: #{tpu_custom_call.1} parent=31 // pred_fallthru
                _
            $region32: #{tpu_custom_call.1} parent=27 // pred_fallthru
              _
            // Predicated region
            $region33: #{tpu_custom_call.1} parent=27 // pred_check
              _
            $region34: #{tpu_custom_call.1} parent=27 // pred_check_branch
              %120 = sbr.rel (0) target = $region36
            $region35: #{tpu_custom_call.1} parent=27 // pred_region
              loop: start=0, step=1, limit=1
              $region37: #{tpu_custom_call.1} parent=35 // loop_pre_header
                _
              $region38: #{tpu_custom_call.1} parent=35 // loop_header
                %s123 = sphi 0, %s127
                %p124 = scmp.ge.s32.totalorder %s123, 1
                %s128 = sphi %s114, %s114
                %s129 = sphi %s112, %s112
              $region39: #{tpu_custom_call.1} parent=35 // loop_header_branch
                %126 = sbr.rel (%p124) target = $region43
              $region40: #{tpu_custom_call.1} parent=35 // loop_body
                %v130 = vld [vmem:[%s128] sm:$0xf]
                %131 = vst [vmem:[%s129] sm:$0xf] %v130
                %v132 = vld [vmem:[%s128 + $0x8] sm:$0xf]
                %133 = vst [vmem:[%s129 + $0x4] sm:$0xf] %v132
                %v134 = vld [vmem:[%s128 + $0x10] sm:$0xf]
                %135 = vst [vmem:[%s129 + $0x8] sm:$0xf] %v134
                %v136 = vld [vmem:[%s128 + $0x18] sm:$0xf]
                %137 = vst [vmem:[%s129 + $0xc] sm:$0xf] %v136
              $region41: #{tpu_custom_call.1} parent=35 // loop_footer
                %s127 = sadd.s32 1, %s123
              $region42: #{tpu_custom_call.1} parent=35 // loop_footer_branch
                %122 = sbr.rel target = $region38
              $region43: #{tpu_custom_call.1} parent=35 // loop_exit
                _
            $region36: #{tpu_custom_call.1} parent=27 // pred_fallthru
              _
          $region28: #{tpu_custom_call.1} parent=23 // pred_fallthru
            _
          %165 = vnop
        $region24: #{tpu_custom_call.1} parent=19 // pred_fallthru
          _
      $region20: #{tpu_custom_call.1} parent=5 // pred_fallthru
        _
      %p166 = scmp.le.s32.totalorder 1, %s11
      %p167 = scmp.lt.s32.totalorder %s11, 3
      %p168 = pnand %p166, %p167
      %p169 = pneg %p168
      // Predicated region
      $region62: #{tpu_custom_call.1} parent=5 // pred_check
        _
      $region63: #{tpu_custom_call.1} parent=5 // pred_check_branch
        %171 = sbr.rel (%p168) target = $region65
      $region64: #{tpu_custom_call.1} parent=5 // pred_region
        %s172 = ssub.s32 %s11, 1
        %s173 = sand.u32 %s24, 1
        %s174 = sand.u32 %s24, 1
        %s175 = smul.addr %s174, 16
        %s176 = scalar_lea.vmem [#allocation2], %s175
        // Predicated region
        $region66: #{tpu_custom_call.1} parent=64 // pred_check
          %p177 = pneg %p37
        $region67: #{tpu_custom_call.1} parent=64 // pred_check_branch
          %179 = sbr.rel (%p177) target = $region69
        $region68: #{tpu_custom_call.1} parent=64 // pred_region
          _
        $region69: #{tpu_custom_call.1} parent=64 // pred_fallthru
          _
        %s180 = sand.u32 %s24, 1
        %s181 = sand.u32 %s24, 1
        %s182 = smul.addr %s181, 16
        %s183 = scalar_lea.vmem [#allocation2], %s182
        %p184 = pneg %p37
        %p185 = pneg %p34
        %p186 = pneg %p58
        %p187 = pneg %p55
        %p188 = pneg %p84
        %p189 = pneg %p81
        %s190 = sand.u32 %s71, 1
        %s191 = scalar_lea.sflag [#allocation4], %s190
        %s192 = sand.u32 %s71, 1
        %s193 = scalar_lea.vmem [#allocation3], %s192
        %v194 = vld [vmem:[%s176] sm:$0xf]
        %v195 = vld [vmem:[%s176 + $0x4] sm:$0xf]
        %v196 = vld [vmem:[%s176 + $0x8] sm:$0xf]
        %v197 = vld [vmem:[%s176 + $0xc] sm:$0xf]
        %v198 = vunpack.c.l.bf16 %v194
        %v199 = vunpack.c.l.bf16 %v195
        %v200 = vunpack.c.l.bf16 %v196
        %v201 = vunpack.c.l.bf16 %v197
        %v202 = vld [vmem:[%s1] sm:$0xff]
        %v203 = vld [vmem:[%s1 + $0x8] sm:$0xff]
        %v204 = vld [vmem:[%s1 + $0x10] sm:$0xff]
        %v205 = vld [vmem:[%s1 + $0x18] sm:$0xff]
        %207 = vset.pattern.permute.xlu0 0
        %208 = vperm.xlu0 %207, %v202
        %v209 = vpop.permute.xlu0 %208
        %212 = vset.pattern.permute.xlu0 0
        %213 = vperm.xlu0 %212, %v203
        %v214 = vpop.permute.xlu0 %213
        %217 = vset.pattern.permute.xlu0 0
        %218 = vperm.xlu0 %217, %v204
        %v219 = vpop.permute.xlu0 %218
        %222 = vset.pattern.permute.xlu0 0
        %223 = vperm.xlu0 %222, %v205
        %v224 = vpop.permute.xlu0 %223
        %v226 = vsub.f32 %v198, %v209
        %v227 = vsub.f32 %v199, %v214
        %v228 = vsub.f32 %v200, %v219
        %v229 = vsub.f32 %v201, %v224
        %v230 = vmul.f32 %v226, %v226
        %v231 = vmul.f32 %v227, %v227
        %v232 = vmul.f32 %v228, %v228
        %v233 = vmul.f32 %v229, %v229
        %v234 = vadd.f32 %v230, %v231
        %v235 = vadd.f32 %v234, %v232
        %v236 = vadd.f32 %v235, %v233
        %v237 = vrot.slane %v236, 4
        %v238 = vadd.f32 %v236, %v237
        %v239 = vrot.slane %v238, 2
        %v240 = vadd.f32 %v238, %v239
        %v241 = vrot.slane %v240, 1
        %v242 = vadd.f32 %v240, %v241
        %243 = vst [vmem:[%s193] sm:$0x1] %v242
        %s244 = sand.u32 %s71, 1
        %s245 = scalar_lea.sflag [#allocation4], %s244
        %s246 = sand.u32 %s71, 1
        %s247 = scalar_lea.vmem [#allocation3], %s246
        // Predicated region
        $region70: #{tpu_custom_call.1} parent=64 // pred_check
          %p248 = pneg %p81
        $region71: #{tpu_custom_call.1} parent=64 // pred_check_branch
          %250 = sbr.rel (%p248) target = $region73
        $region72: #{tpu_custom_call.1} parent=64 // pred_region
          %s252 = ssub.s32 16, 16
          %253 = vsyncadd %s245, %s252
          %s254 = smul.addr %s16, 16
          %s255 = scalar_lea.hbm %s2, %s254
          %s257 = sshll.u32 %s247, 4
          %s258 = int_to_ptr.vmem [resolvable:$true] %s257
          %260 = dma.vmem_to_hbm [thread:$0]  %s258, 16, %s255, %s245
        $region73: #{tpu_custom_call.1} parent=64 // pred_fallthru
          _
      $region65: #{tpu_custom_call.1} parent=5 // pred_fallthru
        _
      %p261 = scmp.le.s32.totalorder 2, %s11
      // Predicated region
      $region74: #{tpu_custom_call.1} parent=5 // pred_check
        %p262 = pneg %p261
      $region75: #{tpu_custom_call.1} parent=5 // pred_check_branch
        %264 = sbr.rel (%p262) target = $region77
      $region76: #{tpu_custom_call.1} parent=5 // pred_region
        %s265 = ssub.s32 %s11, 2
        // Predicated region
        $region78: #{tpu_custom_call.1} parent=76 // pred_check
          %p266 = pneg %p87
        $region79: #{tpu_custom_call.1} parent=76 // pred_check_branch
          %268 = sbr.rel (%p266) target = $region81
        $region80: #{tpu_custom_call.1} parent=76 // pred_region
          %s269 = sand.u32 %s72, 1
          %s270 = scalar_lea.sflag [#allocation4], %s269
          %s271 = sand.u32 %s72, 1
          %s272 = scalar_lea.vmem [#allocation3], %s271
          %273 = dma.done %s270, 16
        $region81: #{tpu_custom_call.1} parent=76 // pred_fallthru
          _
      $region77: #{tpu_custom_call.1} parent=5 // pred_fallthru
        _
    $region6: #{tpu_custom_call.1} parent=1 // loop_footer
      %s15 = sadd.s32 1, %s11
    $region7: #{tpu_custom_call.1} parent=1 // loop_footer_branch
      %10 = sbr.rel target = $region3
    $region8: #{tpu_custom_call.1} parent=1 // loop_exit
      _
    %274 = vsyncpa [#allocation4], 1
    %s275 = scalar_lea.sflag [#allocation4], 1
    %276 = vsyncpa %s275, 1

</llo_original>
